<compile_context>
chip_gen: v5e
topology: v5e:2x2
jax: 0.10.0
libtpu: 0.0.40
codegen_flags: <defaults>
</compile_context>

<pallas_src>
import functools

import numpy as np

import jax
import jax.numpy as jnp
from jax import lax
from jax.experimental import pallas as pl
from jax.experimental.pallas import tpu as pltpu

LANE = 128  # TPU vreg lane width


def _round_up(x, m):
    return ((x + m - 1) // m) * m


# ----------------------------------------------------------------------------
# Best-effort hardware detection (conservative fallbacks: 64 MiB VMEM, 1 TC).
# ----------------------------------------------------------------------------
def _tpu_defaults():
    vmem_cap = 64 << 20          # v7x per-TensorCore VMEM (smallest of targets)
    multi_tc = False
    try:
        vmem_cap = int(pltpu.get_tpu_info().vmem_capacity_bytes)
    except Exception:
        pass
    try:
        kind = jax.devices()[0].device_kind.lower()
        # v7x (and v4/v5p megacore) have >1 TensorCore per chip; v5e/v6e do not.
        multi_tc = any(t in kind for t in ("7", "v4", "v5p"))
        # v5e / v6e have 128 MiB VMEM per TensorCore.
        if any(t in kind for t in ("v5 lite", "v5e", "v6")) and vmem_cap < (100 << 20):
            vmem_cap = 128 << 20
    except Exception:
        pass
    return vmem_cap, multi_tc


# ----------------------------------------------------------------------------
# Pallas kernels.
# ----------------------------------------------------------------------------
def _gemm_bn_act_kernel(a_ref, w_ref, shift_ref, o_ref, *, apply_relu):
    """Single reduction step: o = act(A @ W + shift).  No accumulator scratch."""
    y = jnp.dot(a_ref[...], w_ref[...], preferred_element_type=jnp.float32)
    y = y + shift_ref[...]
    if apply_relu:
        y = jnp.maximum(y, 0.0)
    o_ref[...] = y.astype(o_ref.dtype)


def _gemm_bn_act_kernel_acc(a_ref, w_ref, shift_ref, o_ref, acc_ref, *, apply_relu):
    """K-tiled reduction with f32 VMEM accumulator (pl.when init / finalize)."""
    @pl.when(pl.program_id(2) == 0)
    def _init():
        acc_ref[...] = jnp.zeros_like(acc_ref)

    acc_ref[...] += jnp.dot(a_ref[...], w_ref[...],
                            preferred_element_type=jnp.float32)

    @pl.when(pl.program_id(2) == pl.num_programs(2) - 1)
    def _finalize():
        y = acc_ref[...] + shift_ref[...]
        if apply_relu:
            y = jnp.maximum(y, 0.0)
        o_ref[...] = y.astype(o_ref.dtype)


# ----------------------------------------------------------------------------
# Plain-JAX glue: NHWC im2col (column order kh, kw, c).  K padding is folded
# into the concat so A is materialized exactly once (no extra pad pass).
# ----------------------------------------------------------------------------
def _im2col_nhwc(x_nhwc, k, stride, padding, dilation, extra_k_cols=0):
    N, H, W, C = x_nhwc.shape
    xp = jnp.pad(x_nhwc, ((0, 0), (padding, padding), (padding, padding), (0, 0)))
    Ho = (H + 2 * padding - dilation * (k - 1) - 1) // stride + 1
    Wo = (W + 2 * padding - dilation * (k - 1) - 1) // stride + 1
    cols = []
    for kh in range(k):
        for kw in range(k):
            h0, w0 = kh * dilation, kw * dilation
            cols.append(xp[:, h0:h0 + stride * Ho:stride,
                           w0:w0 + stride * Wo:stride, :])
    if extra_k_cols:
        cols.append(jnp.zeros((N, Ho, Wo, extra_k_cols), x_nhwc.dtype))
    col = jnp.concatenate(cols, axis=-1)            # [N, Ho, Wo, K_pad]
    return col.reshape(N * Ho * Wo, k * k * C + extra_k_cols), Ho, Wo


# ----------------------------------------------------------------------------
# Tiling heuristics.
# ----------------------------------------------------------------------------
def _est_vmem_bytes(tm, tk, tn, single_k, in_itemsize, out_itemsize):
    """Rough double-buffered VMEM footprint of one grid step."""
    a = 2 * tm * tk * in_itemsize      # A tile, double-buffered
    w = 2 * tk * tn * in_itemsize      # W tile, double-buffered
    o = 2 * tm * tn * out_itemsize     # output tile, double-buffered
    sh = 2 * tn * 4                    # shift row
    acc = 0 if single_k else tm * tn * 4
    return a + w + o + sh + acc


def _choose_tiles(M, K, C_out_pad, vmem_budget, max_tm, tn_cap,
                  in_itemsize, out_itemsize):
    """Prefer: full-C_out tn (A read once), single-K (no accumulator), big tm."""
    tn_cands = []
    if C_out_pad <= tn_cap:
        tn_cands.append(C_out_pad)                 # j grid axis collapses to 1
    for c in (512, 256, 128):
        if c < C_out_pad and c <= tn_cap and C_out_pad % c == 0:
            tn_cands.append(c)

    m_cap = max(128, _round_up(M, 128))
    tm_cands = [c for c in (1024, 512, 256, 128) if c <= max_tm and c <= m_cap]
    if not tm_cands:
        tm_cands = [128]

    tk_cands = [(K, True)] + [(c, False) for c in (2048, 1024, 512) if c < K]

    for tn in tn_cands:
        for tk, single_k in tk_cands:
            for tm in tm_cands:
                if _est_vmem_bytes(tm, tk, tn, single_k,
                                   in_itemsize, out_itemsize) <= vmem_budget:
                    return tm, tk, tn, single_k
    # Conservative fallback.
    return 128, min(K, 512), 128, K <= 512


# ----------------------------------------------------------------------------
# Forward pass
# ----------------------------------------------------------------------------
def basic_conv_forward(x, params, *, kernel_size, stride=1, padding=0,
                       dilation=1, groups=1, relu=True, bn=True, eps=1e-5,
                       x_layout="NCHW", out_layout="NCHW",
                       out_dtype=jnp.float32, compute_dtype=jnp.bfloat16,
                       allow_a_input_fusion=False):
    """BasicConv forward.

    x: [N, C_in, H, W] (default NCHW f32) or NHWC with x_layout="NHWC".
    out_layout / out_dtype: set to "NHWC" / bf16 when chaining BasicConv blocks
    to skip the NHWC<->NCHW transposes and halve output HBM traffic.
    compute_dtype: bf16 by default (MXU native); use f32 if full conv accuracy
    for very large C_in*k*k is required (slower, 2x HBM traffic on A/W).
    allow_a_input_fusion: experimental hint letting XLA fuse the im2col
    producer into the A operand of the Pallas custom call (avoids
    materializing the k*k-amplified patch matrix in HBM when it applies).
    """
    assert groups == 1  # TODO(synk): grouped convolution not implemented.
    weight = params["weight"]                       # [C_out, C_in, k, k]
    C_out = weight.shape[0]
    k = kernel_size

    if x_layout == "NCHW":
        N, C_in, H, W = x.shape
        x_nhwc = x.transpose(0, 2, 3, 1)
    else:
        N, H, W, C_in = x.shape
        x_nhwc = x
    x_nhwc = x_nhwc.astype(compute_dtype)
    K = C_in * k * k

    # --- fold BatchNorm (inference / running stats) into scale & shift -------
    bias = params.get("bias")
    bias = jnp.zeros((C_out,), jnp.float32) if bias is None else bias
    if bn:
        scale = params["gamma"] * lax.rsqrt(params["running_var"] + eps)
        shift = (bias - params["running_mean"]) * scale + params["beta"]
    else:
        scale = jnp.ones((C_out,), jnp.float32)
        shift = bias

    C_out_pad = _round_up(C_out, LANE)

    # --- generation-aware tiling ----------------------------------------------
    vmem_cap, multi_tc = _tpu_defaults()
    big_vmem = vmem_cap >= (96 << 20)               # v5e / v6e: 128 MiB
    max_tm = 1024 if big_vmem else 512
    tn_cap = 1024 if big_vmem else 512
    vmem_budget = (vmem_cap * 3) // 5               # ~60% of physical VMEM
    in_itemsize = jnp.dtype(compute_dtype).itemsize
    out_itemsize = jnp.dtype(out_dtype).itemsize

    Ho = (H + 2 * padding - dilation * (k - 1) - 1) // stride + 1
    Wo = (W + 2 * padding - dilation * (k - 1) - 1) // stride + 1
    M = N * Ho * Wo

    tm, tk, tn, single_k = _choose_tiles(M, K, C_out_pad, vmem_budget, max_tm,
                                         tn_cap, in_itemsize, out_itemsize)
    K_pad = K if single_k else _round_up(K, tk)
    gn = C_out_pad // tn

    # Megacore: only shrink tm on chips with >1 TensorCore (v7x).  On 1-TC
    # chips (v5e/v6e) this would just double per-step overhead for nothing.
    if multi_tc:
        while tm > 128 and pl.cdiv(M, tm) * gn < 2:
            tm //= 2
    gm = pl.cdiv(M, tm)

    # --- weights: [C_out,C_in,kh,kw] -> [K_pad, C_out_pad], BN scale folded ---
    w_mat = weight.transpose(2, 3, 1, 0).reshape(K, C_out) * scale[None, :]
    w_mat = jnp.pad(w_mat, ((0, K_pad - K), (0, C_out_pad - C_out))
                    ).astype(compute_dtype)
    shift_row = jnp.pad(shift, (0, C_out_pad - C_out)
                        ).reshape(1, C_out_pad).astype(jnp.float32)

    # --- im2col (K zero-pad folded into the concat; no M pad: the ragged last
    #     M tile is handled by Pallas OOB semantics — garbage reads, dropped
    #     writes — so A takes exactly one HBM write pass) -----------------------
    a, Ho2, Wo2 = _im2col_nhwc(x_nhwc, k, stride, padding, dilation,
                               extra_k_cols=K_pad - K)
    assert (Ho2, Wo2) == (Ho, Wo)

    est = _est_vmem_bytes(tm, tk, tn, single_k, in_itemsize, out_itemsize)
    # Leave headroom below physical VMEM: 48 MiB cap on v7x (64 MiB), 96 MiB
    # cap on v5e/v6e (128 MiB).
    vmem_limit = int(min(max(est + (8 << 20), 32 << 20), (vmem_cap * 3) // 4))

    # Advisory cost estimate so XLA can schedule surrounding HLOs around us.
    a_bytes = int(a.size) * in_itemsize
    w_bytes = int(w_mat.size) * in_itemsize
    o_bytes = M * C_out_pad * out_itemsize
    w_reads = 1 if (single_k and gn == 1) else gm
    cost = pl.CostEstimate(flops=2 * M * K_pad * C_out_pad,
                           transcendentals=0,
                           bytes_accessed=a_bytes * gn + w_bytes * w_reads + o_bytes)

    aif = [True, False, False] if allow_a_input_fusion else None

    if single_k:
        kernel = functools.partial(_gemm_bn_act_kernel, apply_relu=relu)
        grid_spec = pltpu.PrefetchScalarGridSpec(
            num_scalar_prefetch=0,
            grid=(gm, gn),
            in_specs=[
                pl.BlockSpec((tm, tk), lambda i, j: (i, 0)),
                pl.BlockSpec((tk, tn), lambda i, j: (0, j)),
                pl.BlockSpec((1, tn), lambda i, j: (0, j)),
            ],
            out_specs=pl.BlockSpec((tm, tn), lambda i, j: (i, j)),
            scratch_shapes=[],
        )
        dims = ("parallel", "parallel")
    else:
        kernel = functools.partial(_gemm_bn_act_kernel_acc, apply_relu=relu)
        grid_spec = pltpu.PrefetchScalarGridSpec(
            num_scalar_prefetch=0,
            grid=(gm, gn, K_pad // tk),
            in_specs=[
                pl.BlockSpec((tm, tk), lambda i, j, kk: (i, kk)),
                pl.BlockSpec((tk, tn), lambda i, j, kk: (kk, j)),
                pl.BlockSpec((1, tn), lambda i, j, kk: (0, j)),
            ],
            out_specs=pl.BlockSpec((tm, tn), lambda i, j, kk: (i, j)),
            scratch_shapes=[pltpu.VMEM((tm, tn), jnp.float32)],
        )
        dims = ("parallel", "parallel", "arbitrary")

    out_flat = pl.pallas_call(
        kernel,
        out_shape=jax.ShapeDtypeStruct((M, C_out_pad), out_dtype),
        grid_spec=grid_spec,
        compiler_params=pltpu.CompilerParams(
            dimension_semantics=dims,
            vmem_limit_bytes=vmem_limit,
            allow_input_fusion=aif),
        cost_estimate=cost,
    )(a, w_mat, shift_row)

    out_nhwc = out_flat[:, :C_out].reshape(N, Ho, Wo, C_out)
    if out_layout == "NHWC":
        return out_nhwc
    return out_nhwc.transpose(0, 3, 1, 2)           # NCHW


# ----------------------------------------------------------------------------
# Reference (plain JAX) and parameter init
# ----------------------------------------------------------------------------
def _reference_forward(x, params, *, kernel_size, stride, padding, dilation,
                       relu, bn, eps=1e-5):
    """Reference mirroring the kernel's bf16 quantization of A and W, so the
    comparison isolates plumbing (im2col order, BN fold, padding), not bf16."""
    weight = params["weight"]
    C_out = weight.shape[0]
    bias = params.get("bias")
    bias = jnp.zeros((C_out,), jnp.float32) if bias is None else bias
    if bn:
        scale = params["gamma"] * lax.rsqrt(params["running_var"] + eps)
        shift = (bias - params["running_mean"]) * scale + params["beta"]
    else:
        scale = jnp.ones((C_out,), jnp.float32)
        shift = bias
    w_folded = (weight * scale[:, None, None, None]
                ).astype(jnp.bfloat16).astype(jnp.float32)
    xq = x.astype(jnp.bfloat16).astype(jnp.float32)
    y = lax.conv_general_dilated(
        xq, w_folded, window_strides=(stride, stride),
        padding=[(padding, padding), (padding, padding)],
        rhs_dilation=(dilation, dilation),
        dimension_numbers=("NCHW", "OIHW", "NCHW"),
        precision=lax.Precision.HIGHEST)
    y = y + shift[None, :, None, None]
    if relu:
        y = jnp.maximum(y, 0.0)
    return y


def init_basic_conv_params(key, in_planes, out_planes, kernel_size):
    """Deterministic synthetic init (shapes match nn.Conv2d / BatchNorm2d)."""
    k0, k1, k2, k3, k4, k5 = jax.random.split(key, 6)
    weight = 0.1 * jax.random.normal(
        k0, (out_planes, in_planes, kernel_size, kernel_size), jnp.float32)
    bias = 0.1 * jax.random.normal(k1, (out_planes,), jnp.float32)
    gamma = 1.0 + 0.1 * jax.random.normal(k2, (out_planes,), jnp.float32)
    beta = 0.1 * jax.random.normal(k3, (out_planes,), jnp.float32)
    running_mean = 0.1 * jax.random.normal(k4, (out_planes,), jnp.float32)
    running_var = jnp.abs(1.0 + 0.1 * jax.random.normal(
        k5, (out_planes,), jnp.float32))
    return dict(weight=weight, bias=bias, gamma=gamma, beta=beta,
                running_mean=running_mean, running_var=running_var)


if __name__ == "__main__":
    key = jax.random.PRNGKey(0)
    kx, kp = jax.random.split(key)

    # Small shapes consistent with the module: N=2, C_in=4, H=W=16,
    # out_planes=8, kernel_size=3, stride=1, padding=1.
    N, C_in, H, W = 2, 4, 16, 16
    C_out, ksize = 8, 3

    x = jax.random.normal(kx, (N, C_in, H, W), jnp.float32)
    params = init_basic_conv_params(kp, C_in, C_out, ksize)

    fwd = functools.partial(basic_conv_forward, kernel_size=ksize, stride=1,
                            padding=1, dilation=1, relu=True, bn=True)
    out = jax.block_until_ready(jax.jit(fwd)(x, params))
    assert out.shape == (N, C_out, H, W), out.shape

    ref = jax.block_until_ready(_reference_forward(
        x, params, kernel_size=ksize, stride=1, padding=1, dilation=1,
        relu=True, bn=True))
    np.testing.assert_allclose(np.asarray(out), np.asarray(ref),
                               atol=2e-3, rtol=2e-3)

    print("KERNEL_OK")
</pallas_src>

<mosaic_0001>
module attributes {stable_mosaic.version = 11 : i64} {
  func.func @_gemm_bn_act_kernel(%arg0: i32, %arg1: i32, %arg2: memref<512x36xbf16, #tpu.memory_space<vmem>>, %arg3: memref<36x128xbf16, #tpu.memory_space<vmem>>, %arg4: memref<1x128xf32, #tpu.memory_space<vmem>>, %arg5: memref<512x128xf32, #tpu.memory_space<vmem>>) attributes {dimension_semantics = [#tpu.dimension_semantics<parallel>, #tpu.dimension_semantics<parallel>], iteration_bounds = array<i64: 1, 1>, scalar_prefetch = 0 : i64, scratch_operands = 0 : i64, tpu.core_type = #tpu.core_type<tc>, window_params = [{transform_indices = @transform_0, window_bounds = array<i64: 512, 36>}, {transform_indices = @transform_1, window_bounds = array<i64: 36, 128>}, {transform_indices = @transform_2, window_bounds = array<i64: 1, 128>}, {transform_indices = @transform_3, window_bounds = array<i64: 512, 128>}]} {
    %c0 = arith.constant 0 : index
    %c0_0 = arith.constant 0 : index
    %0 = vector.load %arg2[%c0, %c0_0] : memref<512x36xbf16, #tpu.memory_space<vmem>>, vector<512x36xbf16>
    %c0_1 = arith.constant 0 : index
    %c0_2 = arith.constant 0 : index
    %1 = vector.load %arg3[%c0_1, %c0_2] : memref<36x128xbf16, #tpu.memory_space<vmem>>, vector<36x128xbf16>
    %cst = arith.constant dense<0.000000e+00> : vector<512x128xf32>
    %2 = tpu.matmul %0, %1, %cst {dimension_numbers = #tpu.dot_dimension_numbers<[1], [0], [0], [1], [0, 0, 1, 1], [], []>} : vector<512x36xbf16>, vector<36x128xbf16>, vector<512x128xf32> -> vector<512x128xf32>
    %c0_3 = arith.constant 0 : index
    %c0_4 = arith.constant 0 : index
    %3 = vector.load %arg4[%c0_3, %c0_4] : memref<1x128xf32, #tpu.memory_space<vmem>>, vector<1x128xf32>
    %4 = vector.broadcast %3 : vector<1x128xf32> to vector<512x128xf32>
    %5 = arith.addf %2, %4 : vector<512x128xf32>
    %cst_5 = arith.constant 0.000000e+00 : f32
    %6 = vector.broadcast %cst_5 : f32 to vector<512x128xf32>
    %7 = arith.maximumf %5, %6 : vector<512x128xf32>
    %c0_6 = arith.constant 0 : index
    %c0_7 = arith.constant 0 : index
    %8 = vector.load %arg5[%c0_6, %c0_7] : memref<512x128xf32, #tpu.memory_space<vmem>>, vector<512x128xf32>
    tpu.vector_store %arg5[%c0_6, %c0_7], %7 {strides = array<i32>} : memref<512x128xf32, #tpu.memory_space<vmem>>, vector<512x128xf32>,
    return
  }
  func.func @transform_0(%arg0: i32, %arg1: i32) -> (i32, i32) {
    %c0_i32 = arith.constant 0 : i32
    %c0_i32_0 = arith.constant 0 : i32
    return %arg0, %c0_i32 : i32, i32
  }
  func.func @transform_1(%arg0: i32, %arg1: i32) -> (i32, i32) {
    %c0_i32 = arith.constant 0 : i32
    %c0_i32_0 = arith.constant 0 : i32
    return %c0_i32, %arg1 : i32, i32
  }
  func.func @transform_2(%arg0: i32, %arg1: i32) -> (i32, i32) {
    %c0_i32 = arith.constant 0 : i32
    %c0_i32_0 = arith.constant 0 : i32
    return %c0_i32, %arg1 : i32, i32
  }
  func.func @transform_3(%arg0: i32, %arg1: i32) -> (i32, i32) {
    %c0_i32 = arith.constant 0 : i32
    return %arg0, %arg1 : i32, i32
  }
}

</mosaic_0001>

<llo_original>
// kernel: basic_conv_forward.1
$region0: #{basic_conv_forward.1}
  #allocation0 [shape = 'u32[]', space=smem, size = 0x4, offset = 0x4, fixed_abs, tag = 'smem constant byte address 0x4 - core index']
  #allocation1 [shape = 'u32[72,128]{1,0:T(1,128)}', space=vmem, size = 0x9000, scoped, tag = 'internal scratch']
  %s0 = inlined_call_operand.vmem [shape: bf16[512,36], index: 0, kind: input, shape index: {}]
  %s1 = inlined_call_operand.vmem [shape: bf16[36,128], index: 1, kind: input, shape index: {}]
  %s2 = inlined_call_operand.vmem [shape: f32[1,128], index: 2, kind: input, shape index: {}]
  %s3 = inlined_call_operand.vmem [shape: f32[512,128], index: 3, kind: output, shape index: {}]
  %s4 = sld [smem:[#allocation0]]
  $region22: #{basic_conv_forward.1} parent=0
    _
  %s6 = ssub.s32 1, %s4
  %s7 = scalar_select 0, %s6, %s4
  // Predicated region
  $region2: #{basic_conv_forward.1} parent=0 // pred_check
    _
  $region3: #{basic_conv_forward.1} parent=0 // pred_check_branch
    %9 = sbr.rel (0) target = $region5
  $region4: #{basic_conv_forward.1} parent=0 // pred_region
    _
  $region5: #{basic_conv_forward.1} parent=0 // pred_fallthru
    _
  // Predicated region
  $region6: #{basic_conv_forward.1} parent=0 // pred_check
    _
  $region7: #{basic_conv_forward.1} parent=0 // pred_check_branch
    %11 = sbr.rel (0) target = $region9
  $region8: #{basic_conv_forward.1} parent=0 // pred_region
    _
  $region9: #{basic_conv_forward.1} parent=0 // pred_fallthru
    _
  // Predicated region
  $region10: #{basic_conv_forward.1} parent=0 // pred_check
    _
  $region11: #{basic_conv_forward.1} parent=0 // pred_check_branch
    %13 = sbr.rel (0) target = $region13
  $region12: #{basic_conv_forward.1} parent=0 // pred_region
    _
  $region13: #{basic_conv_forward.1} parent=0 // pred_fallthru
    _
  %v15 = vld [vmem:[%s0] sm:$0xf]
  %v16 = vld [vmem:[%s0 + $0x4] sm:$0xf]
  %v17 = vld [vmem:[%s0 + $0x8] sm:$0xf]
  %v18 = vld [vmem:[%s0 + $0xc] sm:$0xf]
  %v19 = vld [vmem:[%s0 + $0x10] sm:$0xf]
  %v20 = vld [vmem:[%s0 + $0x14] sm:$0xf]
  %v21 = vld [vmem:[%s0 + $0x18] sm:$0xf]
  %v22 = vld [vmem:[%s0 + $0x1c] sm:$0xf]
  %v23 = vld [vmem:[%s0 + $0x20] sm:$0xf]
  %v24 = vld [vmem:[%s0 + $0x24] sm:$0xf]
  %v25 = vld [vmem:[%s0 + $0x28] sm:$0xf]
  %v26 = vld [vmem:[%s0 + $0x2c] sm:$0xf]
  %v27 = vld [vmem:[%s0 + $0x30] sm:$0xf]
  %v28 = vld [vmem:[%s0 + $0x34] sm:$0xf]
  %v29 = vld [vmem:[%s0 + $0x38] sm:$0xf]
  %v30 = vld [vmem:[%s0 + $0x3c] sm:$0xf]
  %v31 = vld [vmem:[%s0 + $0x40] sm:$0xf]
  %v32 = vld [vmem:[%s0 + $0x44] sm:$0xf]
  %v33 = vld [vmem:[%s0 + $0x48] sm:$0xf]
  %v34 = vld [vmem:[%s0 + $0x4c] sm:$0xf]
  %v35 = vld [vmem:[%s0 + $0x50] sm:$0xf]
  %v36 = vld [vmem:[%s0 + $0x54] sm:$0xf]
  %v37 = vld [vmem:[%s0 + $0x58] sm:$0xf]
  %v38 = vld [vmem:[%s0 + $0x5c] sm:$0xf]
  %v39 = vld [vmem:[%s0 + $0x60] sm:$0xf]
  %v40 = vld [vmem:[%s0 + $0x64] sm:$0xf]
  %v41 = vld [vmem:[%s0 + $0x68] sm:$0xf]
  %v42 = vld [vmem:[%s0 + $0x6c] sm:$0xf]
  %v43 = vld [vmem:[%s0 + $0x70] sm:$0xf]
  %v44 = vld [vmem:[%s0 + $0x74] sm:$0xf]
  %v45 = vld [vmem:[%s0 + $0x78] sm:$0xf]
  %v46 = vld [vmem:[%s0 + $0x7c] sm:$0xf]
  %v47 = vld [vmem:[%s0 + $0x80] sm:$0xf]
  %v48 = vld [vmem:[%s0 + $0x84] sm:$0xf]
  %v49 = vld [vmem:[%s0 + $0x88] sm:$0xf]
  %v50 = vld [vmem:[%s0 + $0x8c] sm:$0xf]
  %v51 = vld [vmem:[%s0 + $0x90] sm:$0xf]
  %v52 = vld [vmem:[%s0 + $0x94] sm:$0xf]
  %v53 = vld [vmem:[%s0 + $0x98] sm:$0xf]
  %v54 = vld [vmem:[%s0 + $0x9c] sm:$0xf]
  %v55 = vld [vmem:[%s0 + $0xa0] sm:$0xf]
  %v56 = vld [vmem:[%s0 + $0xa4] sm:$0xf]
  %v57 = vld [vmem:[%s0 + $0xa8] sm:$0xf]
  %v58 = vld [vmem:[%s0 + $0xac] sm:$0xf]
  %v59 = vld [vmem:[%s0 + $0xb0] sm:$0xf]
  %v60 = vld [vmem:[%s0 + $0xb4] sm:$0xf]
  %v61 = vld [vmem:[%s0 + $0xb8] sm:$0xf]
  %v62 = vld [vmem:[%s0 + $0xbc] sm:$0xf]
  %v63 = vld [vmem:[%s0 + $0xc0] sm:$0xf]
  %v64 = vld [vmem:[%s0 + $0xc4] sm:$0xf]
  %v65 = vld [vmem:[%s0 + $0xc8] sm:$0xf]
  %v66 = vld [vmem:[%s0 + $0xcc] sm:$0xf]
  %v67 = vld [vmem:[%s0 + $0xd0] sm:$0xf]
  %v68 = vld [vmem:[%s0 + $0xd4] sm:$0xf]
  %v69 = vld [vmem:[%s0 + $0xd8] sm:$0xf]
  %v70 = vld [vmem:[%s0 + $0xdc] sm:$0xf]
  %v71 = vld [vmem:[%s0 + $0xe0] sm:$0xf]
  %v72 = vld [vmem:[%s0 + $0xe4] sm:$0xf]
  %v73 = vld [vmem:[%s0 + $0xe8] sm:$0xf]
  %v74 = vld [vmem:[%s0 + $0xec] sm:$0xf]
  %v75 = vld [vmem:[%s0 + $0xf0] sm:$0xf]
  %v76 = vld [vmem:[%s0 + $0xf4] sm:$0xf]
  %v77 = vld [vmem:[%s0 + $0xf8] sm:$0xf]
  %v78 = vld [vmem:[%s0 + $0xfc] sm:$0xf]
  %v79 = vld [vmem:[%s1] sm:$0xf]
  %v80 = vld [vmem:[%s1 + $0x4] sm:$0xf]
  %v81 = vld [vmem:[%s1 + $0x8] sm:$0xf]
  %v82 = vld [vmem:[%s1 + $0xc] sm:$0xf]
  %v83 = vld [vmem:[%s1 + $0x10] sm:$0x3]
  %v84 = vld [vmem:[%s2] sm:$0x1]
  %v86 = vperm.slane %v84, 0
  %v152 = vunpack.c.l.b16 %v15
  %v153 = vunpack.c.l.b16 %v16
  %v154 = vunpack.c.l.b16 %v17
  %v155 = vunpack.c.l.b16 %v18
  %v156 = vunpack.c.l.b16 %v19
  %v157 = vunpack.c.l.b16 %v20
  %v158 = vunpack.c.l.b16 %v21
  %v159 = vunpack.c.l.b16 %v22
  %v160 = vunpack.c.l.b16 %v23
  %v161 = vunpack.c.l.b16 %v24
  %v162 = vunpack.c.l.b16 %v25
  %v163 = vunpack.c.l.b16 %v26
  %v164 = vunpack.c.l.b16 %v27
  %v165 = vunpack.c.l.b16 %v28
  %v166 = vunpack.c.l.b16 %v29
  %v167 = vunpack.c.l.b16 %v30
  %v168 = vunpack.c.l.b16 %v31
  %v169 = vunpack.c.l.b16 %v32
  %v170 = vunpack.c.l.b16 %v33
  %v171 = vunpack.c.l.b16 %v34
  %v172 = vunpack.c.l.b16 %v35
  %v173 = vunpack.c.l.b16 %v36
  %v174 = vunpack.c.l.b16 %v37
  %v175 = vunpack.c.l.b16 %v38
  %v176 = vunpack.c.l.b16 %v39
  %v177 = vunpack.c.l.b16 %v40
  %v178 = vunpack.c.l.b16 %v41
  %v179 = vunpack.c.l.b16 %v42
  %v180 = vunpack.c.l.b16 %v43
  %v181 = vunpack.c.l.b16 %v44
  %v182 = vunpack.c.l.b16 %v45
  %v183 = vunpack.c.l.b16 %v46
  %v184 = vunpack.c.l.b16 %v47
  %v185 = vunpack.c.l.b16 %v48
  %v186 = vunpack.c.l.b16 %v49
  %v187 = vunpack.c.l.b16 %v50
  %v188 = vunpack.c.l.b16 %v51
  %v189 = vunpack.c.l.b16 %v52
  %v190 = vunpack.c.l.b16 %v53
  %v191 = vunpack.c.l.b16 %v54
  %v192 = vunpack.c.l.b16 %v55
  %v193 = vunpack.c.l.b16 %v56
  %v194 = vunpack.c.l.b16 %v57
  %v195 = vunpack.c.l.b16 %v58
  %v196 = vunpack.c.l.b16 %v59
  %v197 = vunpack.c.l.b16 %v60
  %v198 = vunpack.c.l.b16 %v61
  %v199 = vunpack.c.l.b16 %v62
  %v200 = vunpack.c.l.b16 %v63
  %v201 = vunpack.c.l.b16 %v64
  %v202 = vunpack.c.l.b16 %v65
  %v203 = vunpack.c.l.b16 %v66
  %v204 = vunpack.c.l.b16 %v67
  %v205 = vunpack.c.l.b16 %v68
  %v206 = vunpack.c.l.b16 %v69
  %v207 = vunpack.c.l.b16 %v70
  %v208 = vunpack.c.l.b16 %v71
  %v209 = vunpack.c.l.b16 %v72
  %v210 = vunpack.c.l.b16 %v73
  %v211 = vunpack.c.l.b16 %v74
  %v212 = vunpack.c.l.b16 %v75
  %v213 = vunpack.c.l.b16 %v76
  %v214 = vunpack.c.l.b16 %v77
  %v215 = vunpack.c.l.b16 %v78
  %v216 = vpack.c.b16 %v153, %v152
  %v217 = vpack.c.b16 %v155, %v154
  %v218 = vpack.c.b16 %v157, %v156
  %v219 = vpack.c.b16 %v159, %v158
  %v220 = vpack.c.b16 %v161, %v160
  %v221 = vpack.c.b16 %v163, %v162
  %v222 = vpack.c.b16 %v165, %v164
  %v223 = vpack.c.b16 %v167, %v166
  %v224 = vpack.c.b16 %v169, %v168
  %v225 = vpack.c.b16 %v171, %v170
  %v226 = vpack.c.b16 %v173, %v172
  %v227 = vpack.c.b16 %v175, %v174
  %v228 = vpack.c.b16 %v177, %v176
  %v229 = vpack.c.b16 %v179, %v178
  %v230 = vpack.c.b16 %v181, %v180
  %v231 = vpack.c.b16 %v183, %v182
  %v232 = vpack.c.b16 %v185, %v184
  %v233 = vpack.c.b16 %v187, %v186
  %v234 = vpack.c.b16 %v189, %v188
  %v235 = vpack.c.b16 %v191, %v190
  %v236 = vpack.c.b16 %v193, %v192
  %v237 = vpack.c.b16 %v195, %v194
  %v238 = vpack.c.b16 %v197, %v196
  %v239 = vpack.c.b16 %v199, %v198
  %v240 = vpack.c.b16 %v201, %v200
  %v241 = vpack.c.b16 %v203, %v202
  %v242 = vpack.c.b16 %v205, %v204
  %v243 = vpack.c.b16 %v207, %v206
  %v244 = vpack.c.b16 %v209, %v208
  %v245 = vpack.c.b16 %v211, %v210
  %v246 = vpack.c.b16 %v213, %v212
  %v247 = vpack.c.b16 %v215, %v214
  %v253 = vunpack.c.l.b16 %v79
  %v254 = vunpack.c.l.b16 %v80
  %v255 = vunpack.c.l.b16 %v81
  %v256 = vunpack.c.l.b16 %v82
  %v257 = vunpack.c.l.b16 %v83
  %v258 = vpack.c.b16 %v254, %v253
  %v259 = vpack.c.b16 %v256, %v255
  %v260 = vpack.c.b16 %v257, %v257
  %vm263 = vcmask 293888
  %v265 = vsel %vm263, %v216, 0
  %v268 = vsel %vm263, %v217, 0
  %v271 = vsel %vm263, %v218, 0
  %v274 = vsel %vm263, %v219, 0
  %v277 = vsel %vm263, %v220, 0
  %v280 = vsel %vm263, %v221, 0
  %v283 = vsel %vm263, %v222, 0
  %v286 = vsel %vm263, %v223, 0
  %v289 = vsel %vm263, %v224, 0
  %v292 = vsel %vm263, %v225, 0
  %v295 = vsel %vm263, %v226, 0
  %v298 = vsel %vm263, %v227, 0
  %v301 = vsel %vm263, %v228, 0
  %v304 = vsel %vm263, %v229, 0
  %v307 = vsel %vm263, %v230, 0
  %v310 = vsel %vm263, %v231, 0
  %v313 = vsel %vm263, %v232, 0
  %v316 = vsel %vm263, %v233, 0
  %v319 = vsel %vm263, %v234, 0
  %v322 = vsel %vm263, %v235, 0
  %v325 = vsel %vm263, %v236, 0
  %v328 = vsel %vm263, %v237, 0
  %v331 = vsel %vm263, %v238, 0
  %v334 = vsel %vm263, %v239, 0
  %v337 = vsel %vm263, %v240, 0
  %v340 = vsel %vm263, %v241, 0
  %v343 = vsel %vm263, %v242, 0
  %v346 = vsel %vm263, %v243, 0
  %v349 = vsel %vm263, %v244, 0
  %v352 = vsel %vm263, %v245, 0
  %v355 = vsel %vm263, %v246, 0
  %v358 = vsel %vm263, %v247, 0
  %vm360 = vcmask 1041408
  %v362 = vsel %vm360, %v260, 0
  %364 = vmatpush.bf16.msra.mxu0 0
  %365 = vmatpush.bf16.msra.mxu0 0
  %366 = vmatpush.bf16.msra.mxu0 0
  %367 = vmatpush.bf16.msra.mxu0 0
  %368 = vmatpush.bf16.msra.mxu0 0
  %369 = vmatpush.bf16.msra.mxu0 %v362
  %370 = vmatpush.bf16.msra.mxu0 %v259
  %371 = vmatpush.bf16.msra.mxu0 %v258
  %372 = vmatmul.bf16.gmra.mxu0 %v265
  %v373 = vpop.f32.mrf.mxu0
  %v374 = vadd.f32 %v86, %v373
  %v375 = vpop.f32.mrf.mxu0
  %v376 = vadd.f32 %v86, %v375
  %377 = vmatmul.bf16.gmra.mxu0 %v268
  %v378 = vpop.f32.mrf.mxu0
  %v379 = vadd.f32 %v86, %v378
  %v380 = vpop.f32.mrf.mxu0
  %v381 = vadd.f32 %v86, %v380
  %382 = vmatmul.bf16.gmra.mxu0 %v271
  %v383 = vpop.f32.mrf.mxu0
  %v384 = vadd.f32 %v86, %v383
  %v385 = vpop.f32.mrf.mxu0
  %v386 = vadd.f32 %v86, %v385
  %387 = vmatmul.bf16.gmra.mxu0 %v274
  %v388 = vpop.f32.mrf.mxu0
  %v389 = vadd.f32 %v86, %v388
  %v390 = vpop.f32.mrf.mxu0
  %v391 = vadd.f32 %v86, %v390
  %392 = vmatmul.bf16.gmra.mxu0 %v277
  %v393 = vpop.f32.mrf.mxu0
  %v394 = vadd.f32 %v86, %v393
  %v395 = vpop.f32.mrf.mxu0
  %v396 = vadd.f32 %v86, %v395
  %397 = vmatmul.bf16.gmra.mxu0 %v280
  %v398 = vpop.f32.mrf.mxu0
  %v399 = vadd.f32 %v86, %v398
  %v400 = vpop.f32.mrf.mxu0
  %v401 = vadd.f32 %v86, %v400
  %402 = vmatmul.bf16.gmra.mxu0 %v283
  %v403 = vpop.f32.mrf.mxu0
  %v404 = vadd.f32 %v86, %v403
  %v405 = vpop.f32.mrf.mxu0
  %v406 = vadd.f32 %v86, %v405
  %407 = vmatmul.bf16.gmra.mxu0 %v286
  %v408 = vpop.f32.mrf.mxu0
  %v409 = vadd.f32 %v86, %v408
  %v410 = vpop.f32.mrf.mxu0
  %v411 = vadd.f32 %v86, %v410
  %412 = vmatmul.bf16.gmra.mxu0 %v289
  %v413 = vpop.f32.mrf.mxu0
  %v414 = vadd.f32 %v86, %v413
  %v415 = vpop.f32.mrf.mxu0
  %v416 = vadd.f32 %v86, %v415
  %417 = vmatmul.bf16.gmra.mxu0 %v292
  %v418 = vpop.f32.mrf.mxu0
  %v419 = vadd.f32 %v86, %v418
  %v420 = vpop.f32.mrf.mxu0
  %v421 = vadd.f32 %v86, %v420
  %422 = vmatmul.bf16.gmra.mxu0 %v295
  %v423 = vpop.f32.mrf.mxu0
  %v424 = vadd.f32 %v86, %v423
  %v425 = vpop.f32.mrf.mxu0
  %v426 = vadd.f32 %v86, %v425
  %427 = vmatmul.bf16.gmra.mxu0 %v298
  %v428 = vpop.f32.mrf.mxu0
  %v429 = vadd.f32 %v86, %v428
  %v430 = vpop.f32.mrf.mxu0
  %v431 = vadd.f32 %v86, %v430
  %432 = vmatmul.bf16.gmra.mxu0 %v301
  %v433 = vpop.f32.mrf.mxu0
  %v434 = vadd.f32 %v86, %v433
  %v435 = vpop.f32.mrf.mxu0
  %v436 = vadd.f32 %v86, %v435
  %437 = vmatmul.bf16.gmra.mxu0 %v304
  %v438 = vpop.f32.mrf.mxu0
  %v439 = vadd.f32 %v86, %v438
  %v440 = vpop.f32.mrf.mxu0
  %v441 = vadd.f32 %v86, %v440
  %442 = vmatmul.bf16.gmra.mxu0 %v307
  %v443 = vpop.f32.mrf.mxu0
  %v444 = vadd.f32 %v86, %v443
  %v445 = vpop.f32.mrf.mxu0
  %v446 = vadd.f32 %v86, %v445
  %447 = vmatmul.bf16.gmra.mxu0 %v310
  %v448 = vpop.f32.mrf.mxu0
  %v449 = vadd.f32 %v86, %v448
  %v450 = vpop.f32.mrf.mxu0
  %v451 = vadd.f32 %v86, %v450
  %452 = vmatmul.bf16.gmra.mxu0 %v313
  %v453 = vpop.f32.mrf.mxu0
  %v454 = vadd.f32 %v86, %v453
  %v455 = vpop.f32.mrf.mxu0
  %v456 = vadd.f32 %v86, %v455
  %457 = vmatmul.bf16.gmra.mxu0 %v316
  %v458 = vpop.f32.mrf.mxu0
  %v459 = vadd.f32 %v86, %v458
  %v460 = vpop.f32.mrf.mxu0
  %v461 = vadd.f32 %v86, %v460
  %462 = vmatmul.bf16.gmra.mxu0 %v319
  %v463 = vpop.f32.mrf.mxu0
  %v464 = vadd.f32 %v86, %v463
  %v465 = vpop.f32.mrf.mxu0
  %v466 = vadd.f32 %v86, %v465
  %467 = vmatmul.bf16.gmra.mxu0 %v322
  %v468 = vpop.f32.mrf.mxu0
  %v469 = vadd.f32 %v86, %v468
  %v470 = vpop.f32.mrf.mxu0
  %v471 = vadd.f32 %v86, %v470
  %472 = vmatmul.bf16.gmra.mxu0 %v325
  %v473 = vpop.f32.mrf.mxu0
  %v474 = vadd.f32 %v86, %v473
  %v475 = vpop.f32.mrf.mxu0
  %v476 = vadd.f32 %v86, %v475
  %477 = vmatmul.bf16.gmra.mxu0 %v328
  %v478 = vpop.f32.mrf.mxu0
  %v479 = vadd.f32 %v86, %v478
  %v480 = vpop.f32.mrf.mxu0
  %v481 = vadd.f32 %v86, %v480
  %482 = vmatmul.bf16.gmra.mxu0 %v331
  %v483 = vpop.f32.mrf.mxu0
  %v484 = vadd.f32 %v86, %v483
  %v485 = vpop.f32.mrf.mxu0
  %v486 = vadd.f32 %v86, %v485
  %487 = vmatmul.bf16.gmra.mxu0 %v334
  %v488 = vpop.f32.mrf.mxu0
  %v489 = vadd.f32 %v86, %v488
  %v490 = vpop.f32.mrf.mxu0
  %v491 = vadd.f32 %v86, %v490
  %492 = vmatmul.bf16.gmra.mxu0 %v337
  %v493 = vpop.f32.mrf.mxu0
  %v494 = vadd.f32 %v86, %v493
  %v495 = vpop.f32.mrf.mxu0
  %v496 = vadd.f32 %v86, %v495
  %497 = vmatmul.bf16.gmra.mxu0 %v340
  %v498 = vpop.f32.mrf.mxu0
  %v499 = vadd.f32 %v86, %v498
  %v500 = vpop.f32.mrf.mxu0
  %v501 = vadd.f32 %v86, %v500
  %502 = vmatmul.bf16.gmra.mxu0 %v343
  %v503 = vpop.f32.mrf.mxu0
  %v504 = vadd.f32 %v86, %v503
  %v505 = vpop.f32.mrf.mxu0
  %v506 = vadd.f32 %v86, %v505
  %507 = vmatmul.bf16.gmra.mxu0 %v346
  %v508 = vpop.f32.mrf.mxu0
  %v509 = vadd.f32 %v86, %v508
  %v510 = vpop.f32.mrf.mxu0
  %v511 = vadd.f32 %v86, %v510
  %512 = vmatmul.bf16.gmra.mxu0 %v349
  %v513 = vpop.f32.mrf.mxu0
  %v514 = vadd.f32 %v86, %v513
  %v515 = vpop.f32.mrf.mxu0
  %v516 = vadd.f32 %v86, %v515
  %517 = vmatmul.bf16.gmra.mxu0 %v352
  %v518 = vpop.f32.mrf.mxu0
  %v519 = vadd.f32 %v86, %v518
  %v520 = vpop.f32.mrf.mxu0
  %v521 = vadd.f32 %v86, %v520
  %522 = vmatmul.bf16.gmra.mxu0 %v355
  %v523 = vpop.f32.mrf.mxu0
  %v524 = vadd.f32 %v86, %v523
  %v525 = vpop.f32.mrf.mxu0
  %v526 = vadd.f32 %v86, %v525
  %527 = vmatmul.bf16.gmra.mxu0 %v358
  %v528 = vpop.f32.mrf.mxu0
  %v529 = vadd.f32 %v86, %v528
  %v530 = vpop.f32.mrf.mxu0
  %v531 = vadd.f32 %v86, %v530
  %532 = vdwg.mxu0
  %v533 = vmax.f32 %v374, 0.0
  %v534 = vmax.f32 %v376, 0.0
  %v535 = vmax.f32 %v379, 0.0
  %v536 = vmax.f32 %v381, 0.0
  %v537 = vmax.f32 %v384, 0.0
  %v538 = vmax.f32 %v386, 0.0
  %v539 = vmax.f32 %v389, 0.0
  %v540 = vmax.f32 %v391, 0.0
  %v541 = vmax.f32 %v394, 0.0
  %v542 = vmax.f32 %v396, 0.0
  %v543 = vmax.f32 %v399, 0.0
  %v544 = vmax.f32 %v401, 0.0
  %v545 = vmax.f32 %v404, 0.0
  %v546 = vmax.f32 %v406, 0.0
  %v547 = vmax.f32 %v409, 0.0
  %v548 = vmax.f32 %v411, 0.0
  %v549 = vmax.f32 %v414, 0.0
  %v550 = vmax.f32 %v416, 0.0
  %v551 = vmax.f32 %v419, 0.0
  %v552 = vmax.f32 %v421, 0.0
  %v553 = vmax.f32 %v424, 0.0
  %v554 = vmax.f32 %v426, 0.0
  %v555 = vmax.f32 %v429, 0.0
  %v556 = vmax.f32 %v431, 0.0
  %v557 = vmax.f32 %v434, 0.0
  %v558 = vmax.f32 %v436, 0.0
  %v559 = vmax.f32 %v439, 0.0
  %v560 = vmax.f32 %v441, 0.0
  %v561 = vmax.f32 %v444, 0.0
  %v562 = vmax.f32 %v446, 0.0
  %v563 = vmax.f32 %v449, 0.0
  %v564 = vmax.f32 %v451, 0.0
  %v565 = vmax.f32 %v454, 0.0
  %v566 = vmax.f32 %v456, 0.0
  %v567 = vmax.f32 %v459, 0.0
  %v568 = vmax.f32 %v461, 0.0
  %v569 = vmax.f32 %v464, 0.0
  %v570 = vmax.f32 %v466, 0.0
  %v571 = vmax.f32 %v469, 0.0
  %v572 = vmax.f32 %v471, 0.0
  %v573 = vmax.f32 %v474, 0.0
  %v574 = vmax.f32 %v476, 0.0
  %v575 = vmax.f32 %v479, 0.0
  %v576 = vmax.f32 %v481, 0.0
  %v577 = vmax.f32 %v484, 0.0
  %v578 = vmax.f32 %v486, 0.0
  %v579 = vmax.f32 %v489, 0.0
  %v580 = vmax.f32 %v491, 0.0
  %v581 = vmax.f32 %v494, 0.0
  %v582 = vmax.f32 %v496, 0.0
  %v583 = vmax.f32 %v499, 0.0
  %v584 = vmax.f32 %v501, 0.0
  %v585 = vmax.f32 %v504, 0.0
  %v586 = vmax.f32 %v506, 0.0
  %v587 = vmax.f32 %v509, 0.0
  %v588 = vmax.f32 %v511, 0.0
  %v589 = vmax.f32 %v514, 0.0
  %v590 = vmax.f32 %v516, 0.0
  %v591 = vmax.f32 %v519, 0.0
  %v592 = vmax.f32 %v521, 0.0
  %v593 = vmax.f32 %v524, 0.0
  %v594 = vmax.f32 %v526, 0.0
  %v595 = vmax.f32 %v529, 0.0
  %v596 = vmax.f32 %v531, 0.0
  %597 = vst [vmem:[%s3] sm:$0xff] %v533
  %598 = vst [vmem:[%s3 + $0x8] sm:$0xff] %v534
  %599 = vst [vmem:[%s3 + $0x10] sm:$0xff] %v535
  %600 = vst [vmem:[%s3 + $0x18] sm:$0xff] %v536
  %601 = vst [vmem:[%s3 + $0x20] sm:$0xff] %v537
  %602 = vst [vmem:[%s3 + $0x28] sm:$0xff] %v538
  %603 = vst [vmem:[%s3 + $0x30] sm:$0xff] %v539
  %604 = vst [vmem:[%s3 + $0x38] sm:$0xff] %v540
  %605 = vst [vmem:[%s3 + $0x40] sm:$0xff] %v541
  %606 = vst [vmem:[%s3 + $0x48] sm:$0xff] %v542
  %607 = vst [vmem:[%s3 + $0x50] sm:$0xff] %v543
  %608 = vst [vmem:[%s3 + $0x58] sm:$0xff] %v544
  %609 = vst [vmem:[%s3 + $0x60] sm:$0xff] %v545
  %610 = vst [vmem:[%s3 + $0x68] sm:$0xff] %v546
  %611 = vst [vmem:[%s3 + $0x70] sm:$0xff] %v547
  %612 = vst [vmem:[%s3 + $0x78] sm:$0xff] %v548
  %613 = vst [vmem:[%s3 + $0x80] sm:$0xff] %v549
  %614 = vst [vmem:[%s3 + $0x88] sm:$0xff] %v550
  %615 = vst [vmem:[%s3 + $0x90] sm:$0xff] %v551
  %616 = vst [vmem:[%s3 + $0x98] sm:$0xff] %v552
  %617 = vst [vmem:[%s3 + $0xa0] sm:$0xff] %v553
  %618 = vst [vmem:[%s3 + $0xa8] sm:$0xff] %v554
  %619 = vst [vmem:[%s3 + $0xb0] sm:$0xff] %v555
  %620 = vst [vmem:[%s3 + $0xb8] sm:$0xff] %v556
  %621 = vst [vmem:[%s3 + $0xc0] sm:$0xff] %v557
  %622 = vst [vmem:[%s3 + $0xc8] sm:$0xff] %v558
  %623 = vst [vmem:[%s3 + $0xd0] sm:$0xff] %v559
  %624 = vst [vmem:[%s3 + $0xd8] sm:$0xff] %v560
  %625 = vst [vmem:[%s3 + $0xe0] sm:$0xff] %v561
  %626 = vst [vmem:[%s3 + $0xe8] sm:$0xff] %v562
  %627 = vst [vmem:[%s3 + $0xf0] sm:$0xff] %v563
  %628 = vst [vmem:[%s3 + $0xf8] sm:$0xff] %v564
  %629 = vst [vmem:[%s3 + $0x100] sm:$0xff] %v565
  %630 = vst [vmem:[%s3 + $0x108] sm:$0xff] %v566
  %631 = vst [vmem:[%s3 + $0x110] sm:$0xff] %v567
  %632 = vst [vmem:[%s3 + $0x118] sm:$0xff] %v568
  %633 = vst [vmem:[%s3 + $0x120] sm:$0xff] %v569
  %634 = vst [vmem:[%s3 + $0x128] sm:$0xff] %v570
  %635 = vst [vmem:[%s3 + $0x130] sm:$0xff] %v571
  %636 = vst [vmem:[%s3 + $0x138] sm:$0xff] %v572
  %637 = vst [vmem:[%s3 + $0x140] sm:$0xff] %v573
  %638 = vst [vmem:[%s3 + $0x148] sm:$0xff] %v574
  %639 = vst [vmem:[%s3 + $0x150] sm:$0xff] %v575
  %640 = vst [vmem:[%s3 + $0x158] sm:$0xff] %v576
  %641 = vst [vmem:[%s3 + $0x160] sm:$0xff] %v577
  %642 = vst [vmem:[%s3 + $0x168] sm:$0xff] %v578
  %643 = vst [vmem:[%s3 + $0x170] sm:$0xff] %v579
  %644 = vst [vmem:[%s3 + $0x178] sm:$0xff] %v580
  %645 = vst [vmem:[%s3 + $0x180] sm:$0xff] %v581
  %646 = vst [vmem:[%s3 + $0x188] sm:$0xff] %v582
  %647 = vst [vmem:[%s3 + $0x190] sm:$0xff] %v583
  %648 = vst [vmem:[%s3 + $0x198] sm:$0xff] %v584
  %649 = vst [vmem:[%s3 + $0x1a0] sm:$0xff] %v585
  %650 = vst [vmem:[%s3 + $0x1a8] sm:$0xff] %v586
  %651 = vst [vmem:[%s3 + $0x1b0] sm:$0xff] %v587
  %652 = vst [vmem:[%s3 + $0x1b8] sm:$0xff] %v588
  %653 = vst [vmem:[%s3 + $0x1c0] sm:$0xff] %v589
  %654 = vst [vmem:[%s3 + $0x1c8] sm:$0xff] %v590
  %655 = vst [vmem:[%s3 + $0x1d0] sm:$0xff] %v591
  %656 = vst [vmem:[%s3 + $0x1d8] sm:$0xff] %v592
  %657 = vst [vmem:[%s3 + $0x1e0] sm:$0xff] %v593
  %658 = vst [vmem:[%s3 + $0x1e8] sm:$0xff] %v594
  %659 = vst [vmem:[%s3 + $0x1f0] sm:$0xff] %v595
  %660 = vst [vmem:[%s3 + $0x1f8] sm:$0xff] %v596
  // Predicated region
  $region14: #{basic_conv_forward.1} parent=0 // pred_check
    _
  $region15: #{basic_conv_forward.1} parent=0 // pred_check_branch
    %662 = sbr.rel (0) target = $region17
  $region16: #{basic_conv_forward.1} parent=0 // pred_region
    _
  $region17: #{basic_conv_forward.1} parent=0 // pred_fallthru
    _
  // Predicated region
  $region18: #{basic_conv_forward.1} parent=0 // pred_check
    _
  $region19: #{basic_conv_forward.1} parent=0 // pred_check_branch
    %664 = sbr.rel (0) target = $region21
  $region20: #{basic_conv_forward.1} parent=0 // pred_region
    _
  $region21: #{basic_conv_forward.1} parent=0 // pred_fallthru
    _

</llo_original>
